<compile_context>
chip_gen: v7x
topology: tpu7x:2x2x1
jax: 0.10.0
libtpu: 0.0.40
codegen_flags: <defaults>
</compile_context>

<pallas_src>
import functools

import jax
import jax.numpy as jnp
from jax.experimental import pallas as pl
from jax.experimental.pallas import tpu as pltpu

IN_DIM = 28 * 28          # 784
HIDDEN = 64
OUT = 10
HIDDEN_PAD = 128          # zero-padded hidden width (full lane group / MXU column)
OUT_PAD = 128             # padded class dim -> lane-dense output stores
NEG_BIG = -1e30           # bias for padded class columns (exp underflows to 0 in f32)


def mlp_kernel(x_ref, w1_ref, wstack_ref, bstack_ref, out_ref):
    # x_ref: (TILE_B, 784) f32 — cast to bf16 here (fused into the kernel).
    # w1_ref: (784, 128) bf16; wstack_ref: (3, 128, 128) bf16; bstack_ref: (4, 128) f32.
    b = bstack_ref[...]                                  # (4, 128) f32
    x = x_ref[...].astype(jnp.bfloat16)

    # fc1 + relu (f32 accumulate, f32 elementwise)
    h = jnp.dot(x, w1_ref[...], preferred_element_type=jnp.float32)
    h = jnp.maximum(h + b[0:1, :], 0.0)
    # fc2 + relu
    h = jnp.dot(h.astype(jnp.bfloat16), wstack_ref[0],
                preferred_element_type=jnp.float32)
    h = jnp.maximum(h + b[1:2, :], 0.0)
    # fc3 + relu
    h = jnp.dot(h.astype(jnp.bfloat16), wstack_ref[1],
                preferred_element_type=jnp.float32)
    h = jnp.maximum(h + b[2:3, :], 0.0)
    # fc4 (logits over 128 padded classes; padded columns carry -1e30 bias)
    logits = jnp.dot(h.astype(jnp.bfloat16), wstack_ref[2],
                     preferred_element_type=jnp.float32)
    logits = logits + b[3:4, :]

    # log_softmax over the class axis (padded classes contribute exp(...) == 0)
    m = jnp.max(logits, axis=-1, keepdims=True)
    shifted = logits - m
    lse = jnp.log(jnp.sum(jnp.exp(shifted), axis=-1, keepdims=True))
    out_ref[...] = (shifted - lse).astype(out_ref.dtype)


def prepare_params(params):
    """Pad to lane-friendly widths, pack into 3 arrays, cast matmul operands to bf16."""
    def pad2(w, rows, cols):
        wp = jnp.zeros((rows, cols), jnp.float32)
        return wp.at[: w.shape[0], : w.shape[1]].set(w)

    w1 = pad2(params["w1"], IN_DIM, HIDDEN_PAD).astype(jnp.bfloat16)      # (784,128)
    w_stack = jnp.stack([
        pad2(params["w2"], HIDDEN_PAD, HIDDEN_PAD),
        pad2(params["w3"], HIDDEN_PAD, HIDDEN_PAD),
        pad2(params["w4"], HIDDEN_PAD, OUT_PAD),
    ]).astype(jnp.bfloat16)                                               # (3,128,128)

    b_rows = []
    for name, fill in (("b1", 0.0), ("b2", 0.0), ("b3", 0.0), ("b4", NEG_BIG)):
        row = jnp.full((HIDDEN_PAD,), fill, jnp.float32)
        row = row.at[: params[name].shape[-1]].set(params[name].reshape(-1))
        b_rows.append(row)
    b_stack = jnp.stack(b_rows)                                           # (4,128) f32

    return dict(w1=w1, w_stack=w_stack, b_stack=b_stack)


def pick_tile_b(batch):
    """Tile rows per grid step: <=512, multiple of 16 (bf16 sublanes), prefer a
    divisor of B (no x padding) and >=4 grid steps (v7x megacore + pipelining)."""
    if batch <= 64:
        return batch                          # single full-extent block
    cap = min(512, batch // 4)
    cap -= cap % 16
    for t in range(cap, 15, -16):
        if batch % t == 0:
            return t
    return max(16, cap)                       # fallback (x gets padded)


@functools.partial(jax.jit, static_argnames=("tile_b",))
def _net_forward(x, padded_params, tile_b):
    """x: (B, 784) float32 -> (B, 10) float32 log-probabilities."""
    B = x.shape[0]
    p = padded_params
    num_tiles = pl.cdiv(B, tile_b)
    b_pad = num_tiles * tile_b
    if b_pad != B:
        # Rare: only when no nice divisor of B exists (see pick_tile_b).
        x = jnp.pad(x, ((0, b_pad - B), (0, 0)))

    # Full-array (VMEM-resident) specs for packed weights/biases: same block every step.
    full = lambda a: pl.BlockSpec(a.shape, lambda i, _n=a.ndim: (0,) * _n)

    weight_bytes = (IN_DIM * HIDDEN_PAD + 3 * HIDDEN_PAD * HIDDEN_PAD) * 2 \
                   + 4 * HIDDEN_PAD * 4
    cost = pl.CostEstimate(
        flops=2 * b_pad * (IN_DIM * HIDDEN_PAD + 3 * HIDDEN_PAD * HIDDEN_PAD),
        transcendentals=b_pad * (OUT_PAD + 1),          # exp per class + log per row
        bytes_accessed=b_pad * IN_DIM * 4 + b_pad * OUT_PAD * 2 + weight_bytes,
    )

    out_padded = pl.pallas_call(
        mlp_kernel,
        out_shape=jax.ShapeDtypeStruct((b_pad, OUT_PAD), jnp.bfloat16),
        grid=(num_tiles,),
        in_specs=[
            pl.BlockSpec((tile_b, IN_DIM), lambda i: (i, 0)),   # x: batch-tiled, f32
            full(p["w1"]),
            full(p["w_stack"]),
            full(p["b_stack"]),
        ],
        out_specs=pl.BlockSpec((tile_b, OUT_PAD), lambda i: (i, 0)),
        compiler_params=pltpu.CompilerParams(
            dimension_semantics=("parallel",),  # v7x: shard batch across 2 TCs
        ),
        cost_estimate=cost,
    )(x, p["w1"], p["w_stack"], p["b_stack"])

    # Tiny (B,10) slice + f32 cast; kernel writeback itself stays bf16/lane-dense.
    return out_padded[:B, :OUT].astype(jnp.float32)


def net_forward(x, padded_params, tile_b=None):
    if tile_b is None:
        tile_b = pick_tile_b(x.shape[0])
    return _net_forward(x, padded_params, tile_b)


def init_params(key):
    """Deterministic init matching nn.Linear shapes, stored as (in, out)."""
    dims = [(IN_DIM, HIDDEN), (HIDDEN, HIDDEN), (HIDDEN, HIDDEN), (HIDDEN, OUT)]
    params = {}
    keys = jax.random.split(key, len(dims) * 2)
    for i, (fan_in, fan_out) in enumerate(dims):
        bound = 1.0 / jnp.sqrt(fan_in)
        params[f"w{i + 1}"] = jax.random.uniform(
            keys[2 * i], (fan_in, fan_out), minval=-bound, maxval=bound,
            dtype=jnp.float32)
        params[f"b{i + 1}"] = jax.random.uniform(
            keys[2 * i + 1], (1, fan_out), minval=-bound, maxval=bound,
            dtype=jnp.float32)
    return params


def reference_forward_f32(x, params):
    h = jnp.maximum(x @ params["w1"] + params["b1"], 0.0)
    h = jnp.maximum(h @ params["w2"] + params["b2"], 0.0)
    h = jnp.maximum(h @ params["w3"] + params["b3"], 0.0)
    logits = h @ params["w4"] + params["b4"]
    return jax.nn.log_softmax(logits, axis=1)


def reference_forward_bf16(x, params):
    """Mirrors the kernel's numerics: bf16 matmul operands, f32 accumulation/elementwise."""
    def lin(h, w, b):
        return jnp.dot(h.astype(jnp.bfloat16), w.astype(jnp.bfloat16),
                       preferred_element_type=jnp.float32) + b
    h = jnp.maximum(lin(x, params["w1"], params["b1"]), 0.0)
    h = jnp.maximum(lin(h, params["w2"], params["b2"]), 0.0)
    h = jnp.maximum(lin(h, params["w3"], params["b3"]), 0.0)
    logits = lin(h, params["w4"], params["b4"])
    return jax.nn.log_softmax(logits, axis=1)


if __name__ == "__main__":
    key = jax.random.PRNGKey(0)
    pkey, xkey = jax.random.split(key)
    params = init_params(pkey)
    padded = prepare_params(params)

    # Small batch; pick_tile_b(128) -> 32 rows/step -> 4 pipelined grid steps.
    B = 128
    x = jax.random.normal(xkey, (B, IN_DIM), dtype=jnp.float32)

    out = net_forward(x, padded)
    out = jax.block_until_ready(out)
    assert out.shape == (B, OUT)

    # Numerics-matched reference (bf16 operands, f32 accumulate); tolerance loosened
    # for the bf16 output store.
    ref_bf16 = reference_forward_bf16(x, params)
    assert jnp.allclose(out, ref_bf16, atol=5e-2, rtol=2e-2), "mismatch vs bf16 reference"
    # Full-f32 reference: loose tolerance (bf16 matmul operands + bf16 output).
    ref_f32 = reference_forward_f32(x, params)
    assert jnp.allclose(out, ref_f32, atol=1.5e-1, rtol=1e-1), "mismatch vs f32 reference"

    print("KERNEL_OK")
</pallas_src>

<mosaic_0001>
module attributes {stable_mosaic.version = 11 : i64} {
  func.func @mlp_kernel(%arg0: i32, %arg1: memref<32x784xf32, #tpu.memory_space<vmem>>, %arg2: memref<784x128xbf16, #tpu.memory_space<vmem>>, %arg3: memref<3x128x128xbf16, #tpu.memory_space<vmem>>, %arg4: memref<4x128xf32, #tpu.memory_space<vmem>>, %arg5: memref<32x128xbf16, #tpu.memory_space<vmem>>) attributes {dimension_semantics = [#tpu.dimension_semantics<parallel>], iteration_bounds = array<i64: 4>, scalar_prefetch = 0 : i64, scratch_operands = 0 : i64, tpu.core_type = #tpu.core_type<tc>, window_params = [{transform_indices = @transform_0, window_bounds = array<i64: 32, 784>}, {pipeline_mode = #tpu.pipeline_mode<synchronous>, transform_indices = @transform_1, window_bounds = array<i64: 784, 128>}, {pipeline_mode = #tpu.pipeline_mode<synchronous>, transform_indices = @transform_2, window_bounds = array<i64: 3, 128, 128>}, {pipeline_mode = #tpu.pipeline_mode<synchronous>, transform_indices = @transform_3, window_bounds = array<i64: 4, 128>}, {transform_indices = @transform_4, window_bounds = array<i64: 32, 128>}]} {
    %c0 = arith.constant 0 : index
    %c0_0 = arith.constant 0 : index
    %0 = vector.load %arg4[%c0, %c0_0] : memref<4x128xf32, #tpu.memory_space<vmem>>, vector<4x128xf32>
    %c0_1 = arith.constant 0 : index
    %c0_2 = arith.constant 0 : index
    %1 = vector.load %arg1[%c0_1, %c0_2] : memref<32x784xf32, #tpu.memory_space<vmem>>, vector<32x784xf32>
    %2 = arith.truncf %1 : vector<32x784xf32> to vector<32x784xbf16>
    %c0_3 = arith.constant 0 : index
    %c0_4 = arith.constant 0 : index
    %3 = vector.load %arg2[%c0_3, %c0_4] : memref<784x128xbf16, #tpu.memory_space<vmem>>, vector<784x128xbf16>
    %cst = arith.constant dense<0.000000e+00> : vector<32x128xf32>
    %4 = tpu.matmul %2, %3, %cst {dimension_numbers = #tpu.dot_dimension_numbers<[1], [0], [0], [1], [0, 0, 1, 1], [], []>} : vector<32x784xbf16>, vector<784x128xbf16>, vector<32x128xf32> -> vector<32x128xf32>
    %5 = vector.extract_strided_slice %0 {offsets = [0, 0], sizes = [1, 128], strides = [1, 1]} : vector<4x128xf32> to vector<1x128xf32>
    %6 = vector.broadcast %5 : vector<1x128xf32> to vector<32x128xf32>
    %7 = arith.addf %4, %6 : vector<32x128xf32>
    %cst_5 = arith.constant 0.000000e+00 : f32
    %8 = vector.broadcast %cst_5 : f32 to vector<32x128xf32>
    %9 = arith.maximumf %7, %8 : vector<32x128xf32>
    %10 = arith.truncf %9 : vector<32x128xf32> to vector<32x128xbf16>
    %c0_6 = arith.constant 0 : index
    %c0_7 = arith.constant 0 : index
    %c0_8 = arith.constant 0 : index
    %11 = vector.load %arg3[%c0_6, %c0_7, %c0_8] : memref<3x128x128xbf16, #tpu.memory_space<vmem>>, vector<1x128x128xbf16>
    %12 = vector.shape_cast %11 : vector<1x128x128xbf16> to vector<128x128xbf16>
    %cst_9 = arith.constant dense<0.000000e+00> : vector<32x128xf32>
    %13 = tpu.matmul %10, %12, %cst_9 {dimension_numbers = #tpu.dot_dimension_numbers<[1], [0], [0], [1], [0, 0, 1, 1], [], []>} : vector<32x128xbf16>, vector<128x128xbf16>, vector<32x128xf32> -> vector<32x128xf32>
    %14 = vector.extract_strided_slice %0 {offsets = [1, 0], sizes = [1, 128], strides = [1, 1]} : vector<4x128xf32> to vector<1x128xf32>
    %15 = vector.broadcast %14 : vector<1x128xf32> to vector<32x128xf32>
    %16 = arith.addf %13, %15 : vector<32x128xf32>
    %cst_10 = arith.constant 0.000000e+00 : f32
    %17 = vector.broadcast %cst_10 : f32 to vector<32x128xf32>
    %18 = arith.maximumf %16, %17 : vector<32x128xf32>
    %19 = arith.truncf %18 : vector<32x128xf32> to vector<32x128xbf16>
    %c1 = arith.constant 1 : index
    %c0_11 = arith.constant 0 : index
    %c0_12 = arith.constant 0 : index
    %20 = vector.load %arg3[%c1, %c0_11, %c0_12] : memref<3x128x128xbf16, #tpu.memory_space<vmem>>, vector<1x128x128xbf16>
    %21 = vector.shape_cast %20 : vector<1x128x128xbf16> to vector<128x128xbf16>
    %cst_13 = arith.constant dense<0.000000e+00> : vector<32x128xf32>
    %22 = tpu.matmul %19, %21, %cst_13 {dimension_numbers = #tpu.dot_dimension_numbers<[1], [0], [0], [1], [0, 0, 1, 1], [], []>} : vector<32x128xbf16>, vector<128x128xbf16>, vector<32x128xf32> -> vector<32x128xf32>
    %23 = vector.extract_strided_slice %0 {offsets = [2, 0], sizes = [1, 128], strides = [1, 1]} : vector<4x128xf32> to vector<1x128xf32>
    %24 = vector.broadcast %23 : vector<1x128xf32> to vector<32x128xf32>
    %25 = arith.addf %22, %24 : vector<32x128xf32>
    %cst_14 = arith.constant 0.000000e+00 : f32
    %26 = vector.broadcast %cst_14 : f32 to vector<32x128xf32>
    %27 = arith.maximumf %25, %26 : vector<32x128xf32>
    %28 = arith.truncf %27 : vector<32x128xf32> to vector<32x128xbf16>
    %c2 = arith.constant 2 : index
    %c0_15 = arith.constant 0 : index
    %c0_16 = arith.constant 0 : index
    %29 = vector.load %arg3[%c2, %c0_15, %c0_16] : memref<3x128x128xbf16, #tpu.memory_space<vmem>>, vector<1x128x128xbf16>
    %30 = vector.shape_cast %29 : vector<1x128x128xbf16> to vector<128x128xbf16>
    %cst_17 = arith.constant dense<0.000000e+00> : vector<32x128xf32>
    %31 = tpu.matmul %28, %30, %cst_17 {dimension_numbers = #tpu.dot_dimension_numbers<[1], [0], [0], [1], [0, 0, 1, 1], [], []>} : vector<32x128xbf16>, vector<128x128xbf16>, vector<32x128xf32> -> vector<32x128xf32>
    %32 = vector.extract_strided_slice %0 {offsets = [3, 0], sizes = [1, 128], strides = [1, 1]} : vector<4x128xf32> to vector<1x128xf32>
    %33 = vector.broadcast %32 : vector<1x128xf32> to vector<32x128xf32>
    %34 = arith.addf %31, %33 : vector<32x128xf32>
    %cst_18 = arith.constant dense<0xFF800000> : vector<32xf32>
    %35 = vector.multi_reduction <maximumf>, %34, %cst_18 [1] : vector<32x128xf32> to vector<32xf32>
    %36 = vector.shape_cast %35 : vector<32xf32> to vector<32x1xf32>
    %37 = vector.broadcast %36 : vector<32x1xf32> to vector<32x128xf32>
    %38 = arith.subf %34, %37 : vector<32x128xf32>
    %39 = math.exp %38 : vector<32x128xf32>
    %cst_19 = arith.constant dense<0.000000e+00> : vector<32xf32>
    %40 = vector.multi_reduction <add>, %39, %cst_19 [1] : vector<32x128xf32> to vector<32xf32>
    %41 = vector.shape_cast %40 : vector<32xf32> to vector<32x1xf32>
    %42 = math.log %41 : vector<32x1xf32>
    %43 = vector.broadcast %42 : vector<32x1xf32> to vector<32x128xf32>
    %44 = arith.subf %38, %43 : vector<32x128xf32>
    %45 = arith.truncf %44 : vector<32x128xf32> to vector<32x128xbf16>
    %c0_20 = arith.constant 0 : index
    %c0_21 = arith.constant 0 : index
    %46 = vector.load %arg5[%c0_20, %c0_21] : memref<32x128xbf16, #tpu.memory_space<vmem>>, vector<32x128xbf16>
    tpu.vector_store %arg5[%c0_20, %c0_21], %45 {strides = array<i32>} : memref<32x128xbf16, #tpu.memory_space<vmem>>, vector<32x128xbf16>,
    return
  }
  func.func @transform_0(%arg0: i32) -> (i32, i32) {
    %c0_i32 = arith.constant 0 : i32
    %c0_i32_0 = arith.constant 0 : i32
    return %arg0, %c0_i32 : i32, i32
  }
  func.func @transform_1(%arg0: i32) -> (i32, i32) {
    %c0_i32 = arith.constant 0 : i32
    %c0_i32_0 = arith.constant 0 : i32
    %c0_i32_1 = arith.constant 0 : i32
    return %c0_i32, %c0_i32_0 : i32, i32
  }
  func.func @transform_2(%arg0: i32) -> (i32, i32, i32) {
    %c0_i32 = arith.constant 0 : i32
    %c0_i32_0 = arith.constant 0 : i32
    %c0_i32_1 = arith.constant 0 : i32
    %c0_i32_2 = arith.constant 0 : i32
    return %c0_i32, %c0_i32_0, %c0_i32_1 : i32, i32, i32
  }
  func.func @transform_3(%arg0: i32) -> (i32, i32) {
    %c0_i32 = arith.constant 0 : i32
    %c0_i32_0 = arith.constant 0 : i32
    %c0_i32_1 = arith.constant 0 : i32
    return %c0_i32, %c0_i32_0 : i32, i32
  }
  func.func @transform_4(%arg0: i32) -> (i32, i32) {
    %c0_i32 = arith.constant 0 : i32
    %c0_i32_0 = arith.constant 0 : i32
    return %arg0, %c0_i32 : i32, i32
  }
}

</mosaic_0001>

<llo_original>
// kernel: _net_forward.1
$region0: #{_net_forward.1}
  #allocation0 [shape = 'u32[]', space=smem, size = 0x4, offset = 0x4, fixed_abs, tag = 'smem constant byte address 0x4 - core index']
  #allocation1 [shape = 'u32[144,128]{1,0:T(1,128)}', space=vmem, size = 0x12000, scoped, tag = 'internal scratch']
  %s0 = inlined_call_operand.vmem [shape: f32[128,784], index: 0, kind: input, shape index: {}]
  %s1 = inlined_call_operand.vmem [shape: bf16[784,128], index: 1, kind: input, shape index: {}]
  %s2 = inlined_call_operand.vmem [shape: bf16[3,128,128], index: 2, kind: input, shape index: {}]
  %s3 = inlined_call_operand.vmem [shape: f32[4,128], index: 3, kind: input, shape index: {}]
  %s4 = inlined_call_operand.vmem [shape: bf16[128,128], index: 4, kind: output, shape index: {}]
  %s5 = sld [smem:[#allocation0]]
  $region49: #{_net_forward.1} parent=0
    _
  %s7 = ssub.s32 1, %s5
  %s8 = scalar_select 0, %s7, %s5
  loop: start=0, step=1, limit=6
  $region2: #{_net_forward.1} parent=0 // loop_pre_header
    _
  $region3: #{_net_forward.1} parent=0 // loop_header
    %s10 = sphi 0, %s14
    %p11 = scmp.ge.s32.totalorder %s10, 6
    %s20 = sphi 0, %s22
    %s23 = sphi 0, %s20
    %s24 = sphi 0, %s23
    %s40 = sphi 0, %s24
    %s44 = sphi 0, %s44
    %s46 = sphi 0, %s44
    %s47 = sphi 0, %s46
    %s61 = sphi 0, %s47
    %s65 = sphi 0, %s65
    %s67 = sphi 0, %s65
    %s68 = sphi 0, %s67
    %s82 = sphi 0, %s68
    %s86 = sphi 0, %s86
    %s88 = sphi 0, %s86
    %s89 = sphi 0, %s88
    %s103 = sphi 0, %s89
    %s109 = sphi 0, %s111
    %s112 = sphi 0, %s109
    %s113 = sphi 0, %s112
    %s129 = sphi 0, %s113
  $region4: #{_net_forward.1} parent=0 // loop_header_branch
    %13 = sbr.rel (%p11) target = $region8
  $region5: #{_net_forward.1} parent=0 // loop_body
    %s15 = ssub.s32 %s10, 1
    %s16 = ssub.s32 %s10, 2
    %s17 = sadd.s32 %s10, 1
    %s18 = ssub.s32 %s10, %s17
    %p19 = scmp.eq.s32.totalorder %s18, 0
    %s21 = sadd.s32 %s20, 1
    %s22 = scalar_select %p19, %s20, %s21
    %p25 = pneg %p19
    %p26 = scmp.eq.s32.totalorder %s10, 3
    %p27 = por %p25, %p26
    %p28 = scmp.ne.s32.totalorder %s20, %s23
    %p29 = scmp.eq.s32.totalorder %s10, 0
    %p30 = por %p28, %p29
    %p31 = scmp.ne.s32.totalorder %s20, %s23
    %p32 = scmp.eq.s32.totalorder %s15, 3
    %p33 = por %p31, %p32
    %p34 = scmp.ne.s32.totalorder %s23, %s24
    %p35 = scmp.eq.s32.totalorder %s15, 0
    %p36 = por %p34, %p35
    %p37 = scmp.ne.s32.totalorder %s23, %s24
    %p38 = scmp.eq.s32.totalorder %s16, 3
    %p39 = por %p37, %p38
    %p41 = scmp.ne.s32.totalorder %s24, %s40
    %p42 = scmp.eq.s32.totalorder %s16, 0
    %p43 = por %p41, %p42
    %s45 = sadd.s32 %s44, 1
    %p48 = scmp.eq.s32.totalorder %s10, 3
    %p49 = scmp.ne.s32.totalorder %s44, %s46
    %p50 = scmp.eq.s32.totalorder %s10, 0
    %p51 = por %p49, %p50
    %p52 = scmp.ne.s32.totalorder %s44, %s46
    %p53 = scmp.eq.s32.totalorder %s15, 3
    %p54 = por %p52, %p53
    %p55 = scmp.ne.s32.totalorder %s46, %s47
    %p56 = scmp.eq.s32.totalorder %s15, 0
    %p57 = por %p55, %p56
    %p58 = scmp.ne.s32.totalorder %s46, %s47
    %p59 = scmp.eq.s32.totalorder %s16, 3
    %p60 = por %p58, %p59
    %p62 = scmp.ne.s32.totalorder %s47, %s61
    %p63 = scmp.eq.s32.totalorder %s16, 0
    %p64 = por %p62, %p63
    %s66 = sadd.s32 %s65, 1
    %p69 = scmp.eq.s32.totalorder %s10, 3
    %p70 = scmp.ne.s32.totalorder %s65, %s67
    %p71 = scmp.eq.s32.totalorder %s10, 0
    %p72 = por %p70, %p71
    %p73 = scmp.ne.s32.totalorder %s65, %s67
    %p74 = scmp.eq.s32.totalorder %s15, 3
    %p75 = por %p73, %p74
    %p76 = scmp.ne.s32.totalorder %s67, %s68
    %p77 = scmp.eq.s32.totalorder %s15, 0
    %p78 = por %p76, %p77
    %p79 = scmp.ne.s32.totalorder %s67, %s68
    %p80 = scmp.eq.s32.totalorder %s16, 3
    %p81 = por %p79, %p80
    %p83 = scmp.ne.s32.totalorder %s68, %s82
    %p84 = scmp.eq.s32.totalorder %s16, 0
    %p85 = por %p83, %p84
    %s87 = sadd.s32 %s86, 1
    %p90 = scmp.eq.s32.totalorder %s10, 3
    %p91 = scmp.ne.s32.totalorder %s86, %s88
    %p92 = scmp.eq.s32.totalorder %s10, 0
    %p93 = por %p91, %p92
    %p94 = scmp.ne.s32.totalorder %s86, %s88
    %p95 = scmp.eq.s32.totalorder %s15, 3
    %p96 = por %p94, %p95
    %p97 = scmp.ne.s32.totalorder %s88, %s89
    %p98 = scmp.eq.s32.totalorder %s15, 0
    %p99 = por %p97, %p98
    %p100 = scmp.ne.s32.totalorder %s88, %s89
    %p101 = scmp.eq.s32.totalorder %s16, 3
    %p102 = por %p100, %p101
    %p104 = scmp.ne.s32.totalorder %s89, %s103
    %p105 = scmp.eq.s32.totalorder %s16, 0
    %p106 = por %p104, %p105
    %s107 = ssub.s32 %s10, %s17
    %p108 = scmp.eq.s32.totalorder %s107, 0
    %s110 = sadd.s32 %s109, 1
    %s111 = scalar_select %p108, %s109, %s110
    %p114 = pneg %p108
    %p115 = scmp.eq.s32.totalorder %s10, 3
    %p116 = por %p114, %p115
    %p117 = scmp.ne.s32.totalorder %s109, %s112
    %p118 = scmp.eq.s32.totalorder %s10, 0
    %p119 = por %p117, %p118
    %p120 = scmp.ne.s32.totalorder %s109, %s112
    %p121 = scmp.eq.s32.totalorder %s15, 3
    %p122 = por %p120, %p121
    %p123 = scmp.ne.s32.totalorder %s112, %s113
    %p124 = scmp.eq.s32.totalorder %s15, 0
    %p125 = por %p123, %p124
    %p126 = scmp.ne.s32.totalorder %s112, %s113
    %p127 = scmp.eq.s32.totalorder %s16, 3
    %p128 = por %p126, %p127
    %p130 = scmp.ne.s32.totalorder %s113, %s129
    %p131 = scmp.eq.s32.totalorder %s16, 0
    %p132 = por %p130, %p131
    %p133 = scmp.le.s32.totalorder 1, %s10
    %p134 = scmp.lt.s32.totalorder %s10, 5
    %p135 = pnand %p133, %p134
    %p136 = pneg %p135
    // Predicated region
    $region9: #{_net_forward.1} parent=5 // pred_check
      _
    $region10: #{_net_forward.1} parent=5 // pred_check_branch
      %138 = sbr.rel (%p135) target = $region12
    $region11: #{_net_forward.1} parent=5 // pred_region
      %s139 = ssub.s32 %s10, 1
      // Predicated region
      $region13: #{_net_forward.1} parent=11 // pred_check
        %p140 = pneg %p57
      $region14: #{_net_forward.1} parent=11 // pred_check_branch
        %142 = sbr.rel (%p140) target = $region16
      $region15: #{_net_forward.1} parent=11 // pred_region
        _
      $region16: #{_net_forward.1} parent=11 // pred_fallthru
        _
      // Predicated region
      $region17: #{_net_forward.1} parent=11 // pred_check
        %p143 = pneg %p78
      $region18: #{_net_forward.1} parent=11 // pred_check_branch
        %145 = sbr.rel (%p143) target = $region20
      $region19: #{_net_forward.1} parent=11 // pred_region
        _
      $region20: #{_net_forward.1} parent=11 // pred_fallthru
        _
      // Predicated region
      $region21: #{_net_forward.1} parent=11 // pred_check
        %p146 = pneg %p99
      $region22: #{_net_forward.1} parent=11 // pred_check_branch
        %148 = sbr.rel (%p146) target = $region24
      $region23: #{_net_forward.1} parent=11 // pred_region
        _
      $region24: #{_net_forward.1} parent=11 // pred_fallthru
        _
    $region12: #{_net_forward.1} parent=5 // pred_fallthru
      _
    %p149 = scmp.lt.s32.totalorder %s10, 4
    // Predicated region
    $region25: #{_net_forward.1} parent=5 // pred_check
      %p150 = pneg %p149
    $region26: #{_net_forward.1} parent=5 // pred_check_branch
      %152 = sbr.rel (%p150) target = $region28
    $region27: #{_net_forward.1} parent=5 // pred_region
      // Predicated region
      $region29: #{_net_forward.1} parent=27 // pred_check
        %p153 = pneg %p30
      $region30: #{_net_forward.1} parent=27 // pred_check_branch
        %155 = sbr.rel (%p153) target = $region32
      $region31: #{_net_forward.1} parent=27 // pred_region
        %s156 = smul.u32 4, %s10
        %p157 = scmp.lt.s32.totalorder %s156, 15
        %s158 = scalar_select %p157, %s156, 15
        %s159 = smul.addr %s158, 7
        %s160 = smul.addr %s159, 8
        %s161 = scalar_lea.vmem %s0, %s160
        %s162 = smul.u32 4, %s10
      $region32: #{_net_forward.1} parent=27 // pred_fallthru
        _
    $region28: #{_net_forward.1} parent=5 // pred_fallthru
      _
    %p163 = scmp.le.s32.totalorder 1, %s10
    %p164 = scmp.lt.s32.totalorder %s10, 5
    %p165 = pnand %p163, %p164
    %p166 = pneg %p165
    // Predicated region
    $region33: #{_net_forward.1} parent=5 // pred_check
      _
    $region34: #{_net_forward.1} parent=5 // pred_check_branch
      %168 = sbr.rel (%p165) target = $region36
    $region35: #{_net_forward.1} parent=5 // pred_region
      %s169 = ssub.s32 %s10, 1
      %s170 = smul.u32 4, %s15
      %p171 = scmp.lt.s32.totalorder %s170, 15
      %s172 = scalar_select %p171, %s170, 15
      %s173 = smul.addr %s172, 7
      %s174 = smul.addr %s173, 8
      %s175 = scalar_lea.vmem %s0, %s174
      %p176 = pneg %p36
      %p177 = pneg %p33
      %p178 = pneg %p57
      %p179 = pneg %p54
      %p180 = pneg %p78
      %p181 = pneg %p75
      %p182 = pneg %p99
      %p183 = pneg %p96
      %p184 = pneg %p125
      %p185 = pneg %p122
      %s186 = smul.u32 4, %s15
      %p187 = scmp.lt.s32.totalorder %s186, 15
      %s188 = scalar_select %p187, %s186, 15
      %s189 = smul.addr %s188, 4
      %s190 = scalar_lea.vmem %s4, %s189
      %s191 = smul.u32 4, %s15
      %p192 = scmp.lt.s32.totalorder %s191, 15
      %s193 = scalar_select %p192, %s191, 15
      %s194 = smul.addr %s193, 7
      %s195 = smul.addr %s194, 8
      %s196 = scalar_lea.vmem %s0, %s195
      %s197 = smul.u32 4, %s15
      %s198 = smul.u32 4, %s15
      %p199 = scmp.lt.s32.totalorder %s198, 15
      %s200 = scalar_select %p199, %s198, 15
      %s201 = smul.addr %s200, 4
      %s202 = scalar_lea.vmem %s4, %s201
      %s203 = smul.u32 4, %s15
      %v205 = vld [vmem:[%s3] sm:$0xf]
      %v206 = vld [vmem:[%s196] sm:$0xff]
      %v207 = vld [vmem:[%s196 + $0x8] sm:$0xff]
      %v208 = vld [vmem:[%s196 + $0x10] sm:$0xff]
      %v209 = vld [vmem:[%s196 + $0x18] sm:$0xff]
      %v210 = vld [vmem:[%s196 + $0x20] sm:$0xff]
      %v211 = vld [vmem:[%s196 + $0x28] sm:$0xff]
      %v212 = vld [vmem:[%s196 + $0x30] sm:$0xff]
      %v213 = vld [vmem:[%s196 + $0x38] sm:$0xff]
      %v214 = vld [vmem:[%s196 + $0x40] sm:$0xff]
      %v215 = vld [vmem:[%s196 + $0x48] sm:$0xff]
      %v216 = vld [vmem:[%s196 + $0x50] sm:$0xff]
      %v217 = vld [vmem:[%s196 + $0x58] sm:$0xff]
      %v218 = vld [vmem:[%s196 + $0x60] sm:$0xff]
      %v219 = vld [vmem:[%s196 + $0x68] sm:$0xff]
      %v220 = vld [vmem:[%s196 + $0x70] sm:$0xff]
      %v221 = vld [vmem:[%s196 + $0x78] sm:$0xff]
      %v222 = vld [vmem:[%s196 + $0x80] sm:$0xff]
      %v223 = vld [vmem:[%s196 + $0x88] sm:$0xff]
      %v224 = vld [vmem:[%s196 + $0x90] sm:$0xff]
      %v225 = vld [vmem:[%s196 + $0x98] sm:$0xff]
      %v226 = vld [vmem:[%s196 + $0xa0] sm:$0xff]
      %v227 = vld [vmem:[%s196 + $0xa8] sm:$0xff]
      %v228 = vld [vmem:[%s196 + $0xb0] sm:$0xff]
      %v229 = vld [vmem:[%s196 + $0xb8] sm:$0xff]
      %v230 = vld [vmem:[%s196 + $0xc0] sm:$0xff]
      %v231 = vld [vmem:[%s196 + $0xc8] sm:$0xff]
      %v232 = vld [vmem:[%s196 + $0xd0] sm:$0xff]
      %v233 = vld [vmem:[%s196 + $0xd8] sm:$0xff]
      %v234 = vpack.c.bf16 %v213, %v206
      %v235 = vpack.c.bf16 %v214, %v207
      %v236 = vpack.c.bf16 %v215, %v208
      %v237 = vpack.c.bf16 %v216, %v209
      %v238 = vpack.c.bf16 %v217, %v210
      %v239 = vpack.c.bf16 %v218, %v211
      %v240 = vpack.c.bf16 %v219, %v212
      %v241 = vpack.c.bf16 %v227, %v220
      %v242 = vpack.c.bf16 %v228, %v221
      %v243 = vpack.c.bf16 %v229, %v222
      %v244 = vpack.c.bf16 %v230, %v223
      %v245 = vpack.c.bf16 %v231, %v224
      %v246 = vpack.c.bf16 %v232, %v225
      %v247 = vpack.c.bf16 %v233, %v226
      %v248 = vld [vmem:[%s1] sm:$0xf]
      %v249 = vld [vmem:[%s1 + $0x4] sm:$0xf]
      %v250 = vld [vmem:[%s1 + $0x8] sm:$0xf]
      %v251 = vld [vmem:[%s1 + $0xc] sm:$0xf]
      %v252 = vld [vmem:[%s1 + $0x10] sm:$0xf]
      %v253 = vld [vmem:[%s1 + $0x14] sm:$0xf]
      %v254 = vld [vmem:[%s1 + $0x18] sm:$0xf]
      %v255 = vld [vmem:[%s1 + $0x1c] sm:$0xf]
      %v256 = vld [vmem:[%s1 + $0x20] sm:$0xf]
      %v257 = vld [vmem:[%s1 + $0x24] sm:$0xf]
      %v258 = vld [vmem:[%s1 + $0x28] sm:$0xf]
      %v259 = vld [vmem:[%s1 + $0x2c] sm:$0xf]
      %v260 = vld [vmem:[%s1 + $0x30] sm:$0xf]
      %v261 = vld [vmem:[%s1 + $0x34] sm:$0xf]
      %v262 = vld [vmem:[%s1 + $0x38] sm:$0xf]
      %v263 = vld [vmem:[%s1 + $0x3c] sm:$0xf]
      %v264 = vld [vmem:[%s1 + $0x40] sm:$0xf]
      %v265 = vld [vmem:[%s1 + $0x44] sm:$0xf]
      %v266 = vld [vmem:[%s1 + $0x48] sm:$0xf]
      %v267 = vld [vmem:[%s1 + $0x4c] sm:$0xf]
      %v268 = vld [vmem:[%s1 + $0x50] sm:$0xf]
      %v269 = vld [vmem:[%s1 + $0x54] sm:$0xf]
      %v270 = vld [vmem:[%s1 + $0x58] sm:$0xf]
      %v271 = vld [vmem:[%s1 + $0x5c] sm:$0xf]
      %v272 = vld [vmem:[%s1 + $0x60] sm:$0xf]
      %v273 = vld [vmem:[%s1 + $0x64] sm:$0xf]
      %v274 = vld [vmem:[%s1 + $0x68] sm:$0xf]
      %v275 = vld [vmem:[%s1 + $0x6c] sm:$0xf]
      %v276 = vld [vmem:[%s1 + $0x70] sm:$0xf]
      %v277 = vld [vmem:[%s1 + $0x74] sm:$0xf]
      %v278 = vld [vmem:[%s1 + $0x78] sm:$0xf]
      %v279 = vld [vmem:[%s1 + $0x7c] sm:$0xf]
      %v280 = vld [vmem:[%s1 + $0x80] sm:$0xf]
      %v281 = vld [vmem:[%s1 + $0x84] sm:$0xf]
      %v282 = vld [vmem:[%s1 + $0x88] sm:$0xf]
      %v283 = vld [vmem:[%s1 + $0x8c] sm:$0xf]
      %v284 = vld [vmem:[%s1 + $0x90] sm:$0xf]
      %v285 = vld [vmem:[%s1 + $0x94] sm:$0xf]
      %v286 = vld [vmem:[%s1 + $0x98] sm:$0xf]
      %v287 = vld [vmem:[%s1 + $0x9c] sm:$0xf]
      %v288 = vld [vmem:[%s1 + $0xa0] sm:$0xf]
      %v289 = vld [vmem:[%s1 + $0xa4] sm:$0xf]
      %v290 = vld [vmem:[%s1 + $0xa8] sm:$0xf]
      %v291 = vld [vmem:[%s1 + $0xac] sm:$0xf]
      %v292 = vld [vmem:[%s1 + $0xb0] sm:$0xf]
      %v293 = vld [vmem:[%s1 + $0xb4] sm:$0xf]
      %v294 = vld [vmem:[%s1 + $0xb8] sm:$0xf]
      %v295 = vld [vmem:[%s1 + $0xbc] sm:$0xf]
      %v296 = vld [vmem:[%s1 + $0xc0] sm:$0xf]
      %v297 = vld [vmem:[%s1 + $0xc4] sm:$0xf]
      %v298 = vld [vmem:[%s1 + $0xc8] sm:$0xf]
      %v299 = vld [vmem:[%s1 + $0xcc] sm:$0xf]
      %v300 = vld [vmem:[%s1 + $0xd0] sm:$0xf]
      %v301 = vld [vmem:[%s1 + $0xd4] sm:$0xf]
      %v302 = vld [vmem:[%s1 + $0xd8] sm:$0xf]
      %v303 = vld [vmem:[%s1 + $0xdc] sm:$0xf]
      %v304 = vld [vmem:[%s1 + $0xe0] sm:$0xf]
      %v305 = vld [vmem:[%s1 + $0xe4] sm:$0xf]
      %v306 = vld [vmem:[%s1 + $0xe8] sm:$0xf]
      %v307 = vld [vmem:[%s1 + $0xec] sm:$0xf]
      %v308 = vld [vmem:[%s1 + $0xf0] sm:$0xf]
      %v309 = vld [vmem:[%s1 + $0xf4] sm:$0xf]
      %v310 = vld [vmem:[%s1 + $0xf8] sm:$0xf]
      %v311 = vld [vmem:[%s1 + $0xfc] sm:$0xf]
      %v312 = vld [vmem:[%s1 + $0x100] sm:$0xf]
      %v313 = vld [vmem:[%s1 + $0x104] sm:$0xf]
      %v314 = vld [vmem:[%s1 + $0x108] sm:$0xf]
      %v315 = vld [vmem:[%s1 + $0x10c] sm:$0xf]
      %v316 = vld [vmem:[%s1 + $0x110] sm:$0xf]
      %v317 = vld [vmem:[%s1 + $0x114] sm:$0xf]
      %v318 = vld [vmem:[%s1 + $0x118] sm:$0xf]
      %v319 = vld [vmem:[%s1 + $0x11c] sm:$0xf]
      %v320 = vld [vmem:[%s1 + $0x120] sm:$0xf]
      %v321 = vld [vmem:[%s1 + $0x124] sm:$0xf]
      %v322 = vld [vmem:[%s1 + $0x128] sm:$0xf]
      %v323 = vld [vmem:[%s1 + $0x12c] sm:$0xf]
      %v324 = vld [vmem:[%s1 + $0x130] sm:$0xf]
      %v325 = vld [vmem:[%s1 + $0x134] sm:$0xf]
      %v326 = vld [vmem:[%s1 + $0x138] sm:$0xf]
      %v327 = vld [vmem:[%s1 + $0x13c] sm:$0xf]
      %v328 = vld [vmem:[%s1 + $0x140] sm:$0xf]
      %v329 = vld [vmem:[%s1 + $0x144] sm:$0xf]
      %v330 = vld [vmem:[%s1 + $0x148] sm:$0xf]
      %v331 = vld [vmem:[%s1 + $0x14c] sm:$0xf]
      %v332 = vld [vmem:[%s1 + $0x150] sm:$0xf]
      %v333 = vld [vmem:[%s1 + $0x154] sm:$0xf]
      %v334 = vld [vmem:[%s1 + $0x158] sm:$0xf]
      %v335 = vld [vmem:[%s1 + $0x15c] sm:$0xf]
      %v336 = vld [vmem:[%s1 + $0x160] sm:$0xf]
      %v337 = vld [vmem:[%s1 + $0x164] sm:$0xf]
      %v338 = vld [vmem:[%s1 + $0x168] sm:$0xf]
      %v339 = vld [vmem:[%s1 + $0x16c] sm:$0xf]
      %v340 = vld [vmem:[%s1 + $0x170] sm:$0xf]
      %v341 = vld [vmem:[%s1 + $0x174] sm:$0xf]
      %v342 = vld [vmem:[%s1 + $0x178] sm:$0xf]
      %v343 = vld [vmem:[%s1 + $0x17c] sm:$0xf]
      %v344 = vld [vmem:[%s1 + $0x180] sm:$0xf]
      %v345 = vld [vmem:[%s1 + $0x184] sm:$0xf]
      %v346 = vlaneseq
      %v347 = vshrl.u32 %v346, 7
      %v348 = vsub.s32 0, %v347
      %v349 = vrot.slane %v205, %v348
      %v448 = vunpack.c.l.b16 %v248
      %v449 = vunpack.c.l.b16 %v249
      %v450 = vunpack.c.l.b16 %v250
      %v451 = vunpack.c.l.b16 %v251
      %v452 = vunpack.c.l.b16 %v252
      %v453 = vunpack.c.l.b16 %v253
      %v454 = vunpack.c.l.b16 %v254
      %v455 = vunpack.c.l.b16 %v255
      %v456 = vunpack.c.l.b16 %v256
      %v457 = vunpack.c.l.b16 %v257
      %v458 = vunpack.c.l.b16 %v258
      %v459 = vunpack.c.l.b16 %v259
      %v460 = vunpack.c.l.b16 %v260
      %v461 = vunpack.c.l.b16 %v261
      %v462 = vunpack.c.l.b16 %v262
      %v463 = vunpack.c.l.b16 %v263
      %v464 = vunpack.c.l.b16 %v264
      %v465 = vunpack.c.l.b16 %v265
      %v466 = vunpack.c.l.b16 %v266
      %v467 = vunpack.c.l.b16 %v267
      %v468 = vunpack.c.l.b16 %v268
      %v469 = vunpack.c.l.b16 %v269
      %v470 = vunpack.c.l.b16 %v270
      %v471 = vunpack.c.l.b16 %v271
      %v472 = vunpack.c.l.b16 %v272
      %v473 = vunpack.c.l.b16 %v273
      %v474 = vunpack.c.l.b16 %v274
      %v475 = vunpack.c.l.b16 %v275
      %v476 = vunpack.c.l.b16 %v276
      %v477 = vunpack.c.l.b16 %v277
      %v478 = vunpack.c.l.b16 %v278
      %v479 = vunpack.c.l.b16 %v279
      %v480 = vunpack.c.l.b16 %v280
      %v481 = vunpack.c.l.b16 %v281
      %v482 = vunpack.c.l.b16 %v282
      %v483 = vunpack.c.l.b16 %v283
      %v484 = vunpack.c.l.b16 %v284
      %v485 = vunpack.c.l.b16 %v285
      %v486 = vunpack.c.l.b16 %v286
      %v487 = vunpack.c.l.b16 %v287
      %v488 = vunpack.c.l.b16 %v288
      %v489 = vunpack.c.l.b16 %v289
      %v490 = vunpack.c.l.b16 %v290
      %v491 = vunpack.c.l.b16 %v291
      %v492 = vunpack.c.l.b16 %v292
      %v493 = vunpack.c.l.b16 %v293
      %v494 = vunpack.c.l.b16 %v294
      %v495 = vunpack.c.l.b16 %v295
      %v496 = vunpack.c.l.b16 %v296
      %v497 = vunpack.c.l.b16 %v297
      %v498 = vunpack.c.l.b16 %v298
      %v499 = vunpack.c.l.b16 %v299
      %v500 = vunpack.c.l.b16 %v300
      %v501 = vunpack.c.l.b16 %v301
      %v502 = vunpack.c.l.b16 %v302
      %v503 = vunpack.c.l.b16 %v303
      %v504 = vunpack.c.l.b16 %v304
      %v505 = vunpack.c.l.b16 %v305
      %v506 = vunpack.c.l.b16 %v306
      %v507 = vunpack.c.l.b16 %v307
      %v508 = vunpack.c.l.b16 %v308
      %v509 = vunpack.c.l.b16 %v309
      %v510 = vunpack.c.l.b16 %v310
      %v511 = vunpack.c.l.b16 %v311
      %v512 = vunpack.c.l.b16 %v312
      %v513 = vunpack.c.l.b16 %v313
      %v514 = vunpack.c.l.b16 %v314
      %v515 = vunpack.c.l.b16 %v315
      %v516 = vunpack.c.l.b16 %v316
      %v517 = vunpack.c.l.b16 %v317
      %v518 = vunpack.c.l.b16 %v318
      %v519 = vunpack.c.l.b16 %v319
      %v520 = vunpack.c.l.b16 %v320
      %v521 = vunpack.c.l.b16 %v321
      %v522 = vunpack.c.l.b16 %v322
      %v523 = vunpack.c.l.b16 %v323
      %v524 = vunpack.c.l.b16 %v324
      %v525 = vunpack.c.l.b16 %v325
      %v526 = vunpack.c.l.b16 %v326
      %v527 = vunpack.c.l.b16 %v327
      %v528 = vunpack.c.l.b16 %v328
      %v529 = vunpack.c.l.b16 %v329
      %v530 = vunpack.c.l.b16 %v330
      %v531 = vunpack.c.l.b16 %v331
      %v532 = vunpack.c.l.b16 %v332
      %v533 = vunpack.c.l.b16 %v333
      %v534 = vunpack.c.l.b16 %v334
      %v535 = vunpack.c.l.b16 %v335
      %v536 = vunpack.c.l.b16 %v336
      %v537 = vunpack.c.l.b16 %v337
      %v538 = vunpack.c.l.b16 %v338
      %v539 = vunpack.c.l.b16 %v339
      %v540 = vunpack.c.l.b16 %v340
      %v541 = vunpack.c.l.b16 %v341
      %v542 = vunpack.c.l.b16 %v342
      %v543 = vunpack.c.l.b16 %v343
      %v544 = vunpack.c.l.b16 %v344
      %v545 = vunpack.c.l.b16 %v345
      %v546 = vpack.c.b16 %v449, %v448
      %v547 = vpack.c.b16 %v451, %v450
      %v548 = vpack.c.b16 %v453, %v452
      %v549 = vpack.c.b16 %v455, %v454
      %v550 = vpack.c.b16 %v457, %v456
      %v551 = vpack.c.b16 %v459, %v458
      %v552 = vpack.c.b16 %v461, %v460
      %v553 = vpack.c.b16 %v463, %v462
      %v554 = vpack.c.b16 %v465, %v464
      %v555 = vpack.c.b16 %v467, %v466
      %v556 = vpack.c.b16 %v469, %v468
      %v557 = vpack.c.b16 %v471, %v470
      %v558 = vpack.c.b16 %v473, %v472
      %v559 = vpack.c.b16 %v475, %v474
      %v560 = vpack.c.b16 %v477, %v476
      %v561 = vpack.c.b16 %v479, %v478
      %v562 = vpack.c.b16 %v481, %v480
      %v563 = vpack.c.b16 %v483, %v482
      %v564 = vpack.c.b16 %v485, %v484
      %v565 = vpack.c.b16 %v487, %v486
      %v566 = vpack.c.b16 %v489, %v488
      %v567 = vpack.c.b16 %v491, %v490
      %v568 = vpack.c.b16 %v493, %v492
      %v569 = vpack.c.b16 %v495, %v494
      %v570 = vpack.c.b16 %v497, %v496
      %v571 = vpack.c.b16 %v499, %v498
      %v572 = vpack.c.b16 %v501, %v500
      %v573 = vpack.c.b16 %v503, %v502
      %v574 = vpack.c.b16 %v505, %v504
      %v575 = vpack.c.b16 %v507, %v506
      %v576 = vpack.c.b16 %v509, %v508
      %v577 = vpack.c.b16 %v511, %v510
      %v578 = vpack.c.b16 %v513, %v512
      %v579 = vpack.c.b16 %v515, %v514
      %v580 = vpack.c.b16 %v517, %v516
      %v581 = vpack.c.b16 %v519, %v518
      %v582 = vpack.c.b16 %v521, %v520
      %v583 = vpack.c.b16 %v523, %v522
      %v584 = vpack.c.b16 %v525, %v524
      %v585 = vpack.c.b16 %v527, %v526
      %v586 = vpack.c.b16 %v529, %v528
      %v587 = vpack.c.b16 %v531, %v530
      %v588 = vpack.c.b16 %v533, %v532
      %v589 = vpack.c.b16 %v535, %v534
      %v590 = vpack.c.b16 %v537, %v536
      %v591 = vpack.c.b16 %v539, %v538
      %v592 = vpack.c.b16 %v541, %v540
      %v593 = vpack.c.b16 %v543, %v542
      %v594 = vpack.c.b16 %v545, %v544
      %vm644 = vcmask 130048
      %v646 = vsel %vm644, %v240, 0
      %v649 = vsel %vm644, %v247, 0
      %651 = vmatprep.subr.bf16.mxu0 0
      %652 = vmatpush1.bf16.msra.mxu0 %v546
      %653 = vmatprep.subr.bf16.mxu0 0
      %654 = vmatpush1.bf16.msra.mxu0 %v547
      %655 = vmatprep.subr.bf16.mxu0 0
      %656 = vmatpush1.bf16.msra.mxu0 %v548
      %657 = vmatprep.subr.bf16.mxu0 0
      %658 = vmatpush1.bf16.msra.mxu0 %v549
      %659 = vmatprep.subr.bf16.mxu0 0
      %660 = vmatpush1.bf16.msra.mxu0 %v550
      %661 = vmatprep.subr.bf16.mxu0 0
      %662 = vmatpush1.bf16.msra.mxu0 %v551
      %663 = vmatprep.subr.bf16.mxu0 0
      %664 = vmatpush1.bf16.msra.mxu0 %v552
      %665 = vmatprep.subr.bf16.mxu0 0
      %666 = vmatpush1.bf16.msra.mxu0 %v553
      %667 = vmatprep.subr.bf16.mxu0 0
      %668 = vmatpush1.bf16.msra.mxu0 %v554
      %669 = vmatprep.subr.bf16.mxu0 0
      %670 = vmatpush1.bf16.msra.mxu0 %v555
      %671 = vmatprep.subr.bf16.mxu0 0
      %672 = vmatpush1.bf16.msra.mxu0 %v556
      %673 = vmatprep.subr.bf16.mxu0 0
      %674 = vmatpush1.bf16.msra.mxu0 %v557
      %675 = vmatprep.subr.bf16.mxu0 0
      %676 = vmatpush1.bf16.msra.mxu0 %v558
      %677 = vmatprep.subr.bf16.mxu0 0
      %678 = vmatpush1.bf16.msra.mxu0 %v559
      %679 = vmatprep.subr.bf16.mxu0 0
      %680 = vmatpush1.bf16.msra.mxu0 %v560
      %681 = vmatprep.subr.bf16.mxu0 0
      %682 = vmatpush1.bf16.msra.mxu0 %v561
      %683 = vmatprep.mubr.bf16.mxu0 %v235
      %684 = vmatmul.mubr.bf16.gmra.mrb[0].mxu0 %v234
      %v685 = vpop.f32.mrb[0].mxu0
      %v686 = vadd.f32 %v349, %v685
      %v687 = vpop.f32.mrb[0].mxu0
      %v688 = vpop.f32.mrb[0].mxu0
      %v689 = vadd.f32 %v349, %v688
      %v690 = vpop.f32.mrb[0].mxu0
      %691 = vmatprep.mubr.bf16.mxu0 %v242
      %692 = vmatmul.mubr.bf16.gmra.mrb[0].mxu0 %v241
      %v693 = vpop.f32.mrb[0].mxu0
      %v694 = vadd.f32 %v349, %v693
      %v695 = vpop.f32.mrb[0].mxu0
      %v696 = vpop.f32.mrb[0].mxu0
      %v697 = vadd.f32 %v349, %v696
      %v698 = vpop.f32.mrb[0].mxu0
      %699 = vdwg.mxu0
      %700 = vmatprep.subr.bf16.mxu0 0
      %701 = vmatpush1.bf16.msra.mxu0 %v562
      %702 = vmatprep.subr.bf16.mxu0 0
      %703 = vmatpush1.bf16.msra.mxu0 %v563
      %704 = vmatprep.subr.bf16.mxu0 0
      %705 = vmatpush1.bf16.msra.mxu0 %v564
      %706 = vmatprep.subr.bf16.mxu0 0
      %707 = vmatpush1.bf16.msra.mxu0 %v565
      %708 = vmatprep.subr.bf16.mxu0 0
      %709 = vmatpush1.bf16.msra.mxu0 %v566
      %710 = vmatprep.subr.bf16.mxu0 0
      %711 = vmatpush1.bf16.msra.mxu0 %v567
      %712 = vmatprep.subr.bf16.mxu0 0
      %713 = vmatpush1.bf16.msra.mxu0 %v568
      %714 = vmatprep.subr.bf16.mxu0 0
      %715 = vmatpush1.bf16.msra.mxu0 %v569
      %716 = vmatprep.subr.bf16.mxu0 0
      %717 = vmatpush1.bf16.msra.mxu0 %v570
      %718 = vmatprep.subr.bf16.mxu0 0
      %719 = vmatpush1.bf16.msra.mxu0 %v571
      %720 = vmatprep.subr.bf16.mxu0 0
      %721 = vmatpush1.bf16.msra.mxu0 %v572
      %722 = vmatprep.subr.bf16.mxu0 0
      %723 = vmatpush1.bf16.msra.mxu0 %v573
      %724 = vmatprep.subr.bf16.mxu0 0
      %725 = vmatpush1.bf16.msra.mxu0 %v574
      %726 = vmatprep.subr.bf16.mxu0 0
      %727 = vmatpush1.bf16.msra.mxu0 %v575
      %728 = vmatprep.subr.bf16.mxu0 0
      %729 = vmatpush1.bf16.msra.mxu0 %v576
      %730 = vmatprep.subr.bf16.mxu0 0
      %731 = vmatpush1.bf16.msra.mxu0 %v577
      %732 = vmatprep.mubr.bf16.mxu0 %v237
      %733 = vmatmul.mubr.bf16.gmra.mrb[0].mxu0 %v236
      %v734 = vpop.f32.mrb[0].mxu0
      %v735 = vadd.f32 %v686, %v734
      %v736 = vpop.f32.mrb[0].mxu0
      %v737 = vpop.f32.mrb[0].mxu0
      %v738 = vadd.f32 %v689, %v737
      %v739 = vpop.f32.mrb[0].mxu0
      %740 = vmatprep.mubr.bf16.mxu0 %v244
      %741 = vmatmul.mubr.bf16.gmra.mrb[0].mxu0 %v243
      %v742 = vpop.f32.mrb[0].mxu0
      %v743 = vadd.f32 %v694, %v742
      %v744 = vpop.f32.mrb[0].mxu0
      %v745 = vpop.f32.mrb[0].mxu0
      %v746 = vadd.f32 %v697, %v745
      %v747 = vpop.f32.mrb[0].mxu0
      %748 = vdwg.mxu0
      %749 = vmatprep.subr.bf16.mxu0 0
      %750 = vmatpush1.bf16.msra.mxu0 %v578
      %751 = vmatprep.subr.bf16.mxu0 0
      %752 = vmatpush1.bf16.msra.mxu0 %v579
      %753 = vmatprep.subr.bf16.mxu0 0
      %754 = vmatpush1.bf16.msra.mxu0 %v580
      %755 = vmatprep.subr.bf16.mxu0 0
      %756 = vmatpush1.bf16.msra.mxu0 %v581
      %757 = vmatprep.subr.bf16.mxu0 0
      %758 = vmatpush1.bf16.msra.mxu0 %v582
      %759 = vmatprep.subr.bf16.mxu0 0
      %760 = vmatpush1.bf16.msra.mxu0 %v583
      %761 = vmatprep.subr.bf16.mxu0 0
      %762 = vmatpush1.bf16.msra.mxu0 %v584
      %763 = vmatprep.subr.bf16.mxu0 0
      %764 = vmatpush1.bf16.msra.mxu0 %v585
      %765 = vmatprep.subr.bf16.mxu0 0
      %766 = vmatpush1.bf16.msra.mxu0 %v586
      %767 = vmatprep.subr.bf16.mxu0 0
      %768 = vmatpush1.bf16.msra.mxu0 %v587
      %769 = vmatprep.subr.bf16.mxu0 0
      %770 = vmatpush1.bf16.msra.mxu0 %v588
      %771 = vmatprep.subr.bf16.mxu0 0
      %772 = vmatpush1.bf16.msra.mxu0 %v589
      %773 = vmatprep.subr.bf16.mxu0 0
      %774 = vmatpush1.bf16.msra.mxu0 %v590
      %775 = vmatprep.subr.bf16.mxu0 0
      %776 = vmatpush1.bf16.msra.mxu0 %v591
      %777 = vmatprep.subr.bf16.mxu0 0
      %778 = vmatpush1.bf16.msra.mxu0 %v592
      %779 = vmatprep.subr.bf16.mxu0 0
      %780 = vmatpush1.bf16.msra.mxu0 %v593
      %781 = vmatprep.mubr.bf16.mxu0 %v239
      %782 = vmatmul.mubr.bf16.gmra.mrb[0].mxu0 %v238
      %v783 = vpop.f32.mrb[0].mxu0
      %v784 = vadd.f32 %v735, %v783
      %v785 = vpop.f32.mrb[0].mxu0
      %v786 = vpop.f32.mrb[0].mxu0
      %v787 = vadd.f32 %v738, %v786
      %v788 = vpop.f32.mrb[0].mxu0
      %789 = vmatprep.mubr.bf16.mxu0 %v246
      %790 = vmatmul.mubr.bf16.gmra.mrb[0].mxu0 %v245
      %v791 = vpop.f32.mrb[0].mxu0
      %v792 = vadd.f32 %v743, %v791
      %v793 = vpop.f32.mrb[0].mxu0
      %v794 = vpop.f32.mrb[0].mxu0
      %v795 = vadd.f32 %v746, %v794
      %v796 = vpop.f32.mrb[0].mxu0
      %797 = vdwg.mxu0
      %798 = vmatprep.subr.bf16.mxu0 0
      %799 = vmatpush1.bf16.msra.mxu0 %v594
      %800 = vmatprep.subr.bf16.mxu0 0
      %801 = vmatpush1.bf16.msra.mxu0 0
      %802 = vmatprep.subr.bf16.mxu0 0
      %803 = vmatpush1.bf16.msra.mxu0 0
      %804 = vmatprep.subr.bf16.mxu0 0
      %805 = vmatpush1.bf16.msra.mxu0 0
      %806 = vmatprep.subr.bf16.mxu0 0
      %807 = vmatpush1.bf16.msra.mxu0 0
      %808 = vmatprep.subr.bf16.mxu0 0
      %809 = vmatpush1.bf16.msra.mxu0 0
      %810 = vmatprep.subr.bf16.mxu0 0
      %811 = vmatpush1.bf16.msra.mxu0 0
      %812 = vmatprep.subr.bf16.mxu0 0
      %813 = vmatpush1.bf16.msra.mxu0 0
      %814 = vmatprep.subr.bf16.mxu0 0
      %815 = vmatpush1.bf16.msra.mxu0 0
      %816 = vmatprep.subr.bf16.mxu0 0
      %817 = vmatpush1.bf16.msra.mxu0 0
      %818 = vmatprep.subr.bf16.mxu0 0
      %819 = vmatpush1.bf16.msra.mxu0 0
      %820 = vmatprep.subr.bf16.mxu0 0
      %821 = vmatpush1.bf16.msra.mxu0 0
      %822 = vmatprep.subr.bf16.mxu0 0
      %823 = vmatpush1.bf16.msra.mxu0 0
      %824 = vmatprep.subr.bf16.mxu0 0
      %825 = vmatpush1.bf16.msra.mxu0 0
      %826 = vmatprep.subr.bf16.mxu0 0
      %827 = vmatpush1.bf16.msra.mxu0 0
      %828 = vmatprep.subr.bf16.mxu0 0
      %829 = vmatpush1.bf16.msra.mxu0 0
      %830 = vmatprep.mubr.bf16.mxu0 0
      %831 = vmatmul.mubr.bf16.gmra.mrb[0].mxu0 %v646
      %v832 = vpop.f32.mrb[0].mxu0
      %v833 = vadd.f32 %v784, %v832
      %v834 = vpop.f32.mrb[0].mxu0
      %v835 = vpop.f32.mrb[0].mxu0
      %v836 = vadd.f32 %v787, %v835
      %v837 = vpop.f32.mrb[0].mxu0
      %838 = vmatprep.mubr.bf16.mxu0 0
      %839 = vmatmul.mubr.bf16.gmra.mrb[0].mxu0 %v649
      %v840 = vpop.f32.mrb[0].mxu0
      %v841 = vadd.f32 %v792, %v840
      %v842 = vpop.f32.mrb[0].mxu0
      %v843 = vpop.f32.mrb[0].mxu0
      %v844 = vadd.f32 %v795, %v843
      %v845 = vpop.f32.mrb[0].mxu0
      %846 = vdwg.mxu0
      %v847 = vmax.f32 %v833, 0.0
      %v848 = vmax.f32 %v836, 0.0
      %v849 = vmax.f32 %v841, 0.0
      %v850 = vmax.f32 %v844, 0.0
      %v851 = vpack.c.bf16 %v848, %v847
      %v852 = vpack.c.bf16 %v850, %v849
      %v853 = vld [vmem:[%s2] sm:$0xf]
      %v854 = vld [vmem:[%s2 + $0x4] sm:$0xf]
      %v855 = vld [vmem:[%s2 + $0x8] sm:$0xf]
      %v856 = vld [vmem:[%s2 + $0xc] sm:$0xf]
      %v857 = vld [vmem:[%s2 + $0x10] sm:$0xf]
      %v858 = vld [vmem:[%s2 + $0x14] sm:$0xf]
      %v859 = vld [vmem:[%s2 + $0x18] sm:$0xf]
      %v860 = vld [vmem:[%s2 + $0x1c] sm:$0xf]
      %v861 = vld [vmem:[%s2 + $0x20] sm:$0xf]
      %v862 = vld [vmem:[%s2 + $0x24] sm:$0xf]
      %v863 = vld [vmem:[%s2 + $0x28] sm:$0xf]
      %v864 = vld [vmem:[%s2 + $0x2c] sm:$0xf]
      %v865 = vld [vmem:[%s2 + $0x30] sm:$0xf]
      %v866 = vld [vmem:[%s2 + $0x34] sm:$0xf]
      %v867 = vld [vmem:[%s2 + $0x38] sm:$0xf]
      %v868 = vld [vmem:[%s2 + $0x3c] sm:$0xf]
      %v869 = vlaneseq
      %v870 = vshrl.u32 %v869, 7
      %v871 = vsub.s32 1, %v870
      %v872 = vrot.slane %v205, %v871
      %v889 = vunpack.c.l.b16 %v853
      %v890 = vunpack.c.l.b16 %v854
      %v891 = vunpack.c.l.b16 %v855
      %v892 = vunpack.c.l.b16 %v856
      %v893 = vunpack.c.l.b16 %v857
      %v894 = vunpack.c.l.b16 %v858
      %v895 = vunpack.c.l.b16 %v859
      %v896 = vunpack.c.l.b16 %v860
      %v897 = vunpack.c.l.b16 %v861
      %v898 = vunpack.c.l.b16 %v862
      %v899 = vunpack.c.l.b16 %v863
      %v900 = vunpack.c.l.b16 %v864
      %v901 = vunpack.c.l.b16 %v865
      %v902 = vunpack.c.l.b16 %v866
      %v903 = vunpack.c.l.b16 %v867
      %v904 = vunpack.c.l.b16 %v868
      %v905 = vpack.c.b16 %v890, %v889
      %v906 = vpack.c.b16 %v892, %v891
      %v907 = vpack.c.b16 %v894, %v893
      %v908 = vpack.c.b16 %v896, %v895
      %v909 = vpack.c.b16 %v898, %v897
      %v910 = vpack.c.b16 %v900, %v899
      %v911 = vpack.c.b16 %v902, %v901
      %v912 = vpack.c.b16 %v904, %v903
      %921 = vmatprep.subr.bf16.mxu0 0
      %922 = vmatpush1.bf16.msra.mxu0 %v905
      %923 = vmatprep.subr.bf16.mxu0 0
      %924 = vmatpush1.bf16.msra.mxu0 %v906
      %925 = vmatprep.subr.bf16.mxu0 0
      %926 = vmatpush1.bf16.msra.mxu0 %v907
      %927 = vmatprep.subr.bf16.mxu0 0
      %928 = vmatpush1.bf16.msra.mxu0 %v908
      %929 = vmatprep.subr.bf16.mxu0 0
      %930 = vmatpush1.bf16.msra.mxu0 %v909
      %931 = vmatprep.subr.bf16.mxu0 0
      %932 = vmatpush1.bf16.msra.mxu0 %v910
      %933 = vmatprep.subr.bf16.mxu0 0
      %934 = vmatpush1.bf16.msra.mxu0 %v911
      %935 = vmatprep.subr.bf16.mxu0 0
      %936 = vmatpush1.bf16.msra.mxu0 %v912
      %937 = vmatprep.subr.bf16.mxu0 0
      %938 = vmatpush1.bf16.msra.mxu0 0
      %939 = vmatprep.subr.bf16.mxu0 0
      %940 = vmatpush1.bf16.msra.mxu0 0
      %941 = vmatprep.subr.bf16.mxu0 0
      %942 = vmatpush1.bf16.msra.mxu0 0
      %943 = vmatprep.subr.bf16.mxu0 0
      %944 = vmatpush1.bf16.msra.mxu0 0
      %945 = vmatprep.subr.bf16.mxu0 0
      %946 = vmatpush1.bf16.msra.mxu0 0
      %947 = vmatprep.subr.bf16.mxu0 0
      %948 = vmatpush1.bf16.msra.mxu0 0
      %949 = vmatprep.subr.bf16.mxu0 0
      %950 = vmatpush1.bf16.msra.mxu0 0
      %951 = vmatprep.subr.bf16.mxu0 0
      %952 = vmatpush1.bf16.msra.mxu0 0
      %953 = vmatprep.mubr.bf16.mxu0 0
      %954 = vmatmul.mubr.bf16.gmra.mrb[0].mxu0 %v851
      %v955 = vpop.f32.mrb[0].mxu0
      %v956 = vadd.f32 %v872, %v955
      %v957 = vpop.f32.mrb[0].mxu0
      %v958 = vpop.f32.mrb[0].mxu0
      %v959 = vadd.f32 %v872, %v958
      %v960 = vpop.f32.mrb[0].mxu0
      %961 = vmatprep.mubr.bf16.mxu0 0
      %962 = vmatmul.mubr.bf16.gmra.mrb[0].mxu0 %v852
      %v963 = vpop.f32.mrb[0].mxu0
      %v964 = vadd.f32 %v872, %v963
      %v965 = vpop.f32.mrb[0].mxu0
      %v966 = vpop.f32.mrb[0].mxu0
      %v967 = vadd.f32 %v872, %v966
      %v968 = vpop.f32.mrb[0].mxu0
      %969 = vdwg.mxu0
      %v970 = vmax.f32 %v956, 0.0
      %v971 = vmax.f32 %v959, 0.0
      %v972 = vmax.f32 %v964, 0.0
      %v973 = vmax.f32 %v967, 0.0
      %v974 = vpack.c.bf16 %v971, %v970
      %v975 = vpack.c.bf16 %v973, %v972
      %s976 = scalar_lea.vmem %s2, 64
      %v977 = vld [vmem:[%s976] sm:$0xf]
      %v978 = vld [vmem:[%s976 + $0x4] sm:$0xf]
      %v979 = vld [vmem:[%s976 + $0x8] sm:$0xf]
      %v980 = vld [vmem:[%s976 + $0xc] sm:$0xf]
      %v981 = vld [vmem:[%s976 + $0x10] sm:$0xf]
      %v982 = vld [vmem:[%s976 + $0x14] sm:$0xf]
      %v983 = vld [vmem:[%s976 + $0x18] sm:$0xf]
      %v984 = vld [vmem:[%s976 + $0x1c] sm:$0xf]
      %v985 = vld [vmem:[%s976 + $0x20] sm:$0xf]
      %v986 = vld [vmem:[%s976 + $0x24] sm:$0xf]
      %v987 = vld [vmem:[%s976 + $0x28] sm:$0xf]
      %v988 = vld [vmem:[%s976 + $0x2c] sm:$0xf]
      %v989 = vld [vmem:[%s976 + $0x30] sm:$0xf]
      %v990 = vld [vmem:[%s976 + $0x34] sm:$0xf]
      %v991 = vld [vmem:[%s976 + $0x38] sm:$0xf]
      %v992 = vld [vmem:[%s976 + $0x3c] sm:$0xf]
      %v993 = vlaneseq
      %v994 = vshrl.u32 %v993, 7
      %v995 = vsub.s32 2, %v994
      %v996 = vrot.slane %v205, %v995
      %v1013 = vunpack.c.l.b16 %v977
      %v1014 = vunpack.c.l.b16 %v978
      %v1015 = vunpack.c.l.b16 %v979
      %v1016 = vunpack.c.l.b16 %v980
      %v1017 = vunpack.c.l.b16 %v981
      %v1018 = vunpack.c.l.b16 %v982
      %v1019 = vunpack.c.l.b16 %v983
      %v1020 = vunpack.c.l.b16 %v984
      %v1021 = vunpack.c.l.b16 %v985
      %v1022 = vunpack.c.l.b16 %v986
      %v1023 = vunpack.c.l.b16 %v987
      %v1024 = vunpack.c.l.b16 %v988
      %v1025 = vunpack.c.l.b16 %v989
      %v1026 = vunpack.c.l.b16 %v990
      %v1027 = vunpack.c.l.b16 %v991
      %v1028 = vunpack.c.l.b16 %v992
      %v1029 = vpack.c.b16 %v1014, %v1013
      %v1030 = vpack.c.b16 %v1016, %v1015
      %v1031 = vpack.c.b16 %v1018, %v1017
      %v1032 = vpack.c.b16 %v1020, %v1019
      %v1033 = vpack.c.b16 %v1022, %v1021
      %v1034 = vpack.c.b16 %v1024, %v1023
      %v1035 = vpack.c.b16 %v1026, %v1025
      %v1036 = vpack.c.b16 %v1028, %v1027
      %1045 = vmatprep.subr.bf16.mxu0 0
      %1046 = vmatpush1.bf16.msra.mxu0 %v1029
      %1047 = vmatprep.subr.bf16.mxu0 0
      %1048 = vmatpush1.bf16.msra.mxu0 %v1030
      %1049 = vmatprep.subr.bf16.mxu0 0
      %1050 = vmatpush1.bf16.msra.mxu0 %v1031
      %1051 = vmatprep.subr.bf16.mxu0 0
      %1052 = vmatpush1.bf16.msra.mxu0 %v1032
      %1053 = vmatprep.subr.bf16.mxu0 0
      %1054 = vmatpush1.bf16.msra.mxu0 %v1033
      %1055 = vmatprep.subr.bf16.mxu0 0
      %1056 = vmatpush1.bf16.msra.mxu0 %v1034
      %1057 = vmatprep.subr.bf16.mxu0 0
      %1058 = vmatpush1.bf16.msra.mxu0 %v1035
      %1059 = vmatprep.subr.bf16.mxu0 0
      %1060 = vmatpush1.bf16.msra.mxu0 %v1036
      %1061 = vmatprep.subr.bf16.mxu0 0
      %1062 = vmatpush1.bf16.msra.mxu0 0
      %1063 = vmatprep.subr.bf16.mxu0 0
      %1064 = vmatpush1.bf16.msra.mxu0 0
      %1065 = vmatprep.subr.bf16.mxu0 0
      %1066 = vmatpush1.bf16.msra.mxu0 0
      %1067 = vmatprep.subr.bf16.mxu0 0
      %1068 = vmatpush1.bf16.msra.mxu0 0
      %1069 = vmatprep.subr.bf16.mxu0 0
      %1070 = vmatpush1.bf16.msra.mxu0 0
      %1071 = vmatprep.subr.bf16.mxu0 0
      %1072 = vmatpush1.bf16.msra.mxu0 0
      %1073 = vmatprep.subr.bf16.mxu0 0
      %1074 = vmatpush1.bf16.msra.mxu0 0
      %1075 = vmatprep.subr.bf16.mxu0 0
      %1076 = vmatpush1.bf16.msra.mxu0 0
      %1077 = vmatprep.mubr.bf16.mxu0 0
      %1078 = vmatmul.mubr.bf16.gmra.mrb[0].mxu0 %v974
      %v1079 = vpop.f32.mrb[0].mxu0
      %v1080 = vadd.f32 %v996, %v1079
      %v1081 = vpop.f32.mrb[0].mxu0
      %v1082 = vpop.f32.mrb[0].mxu0
      %v1083 = vadd.f32 %v996, %v1082
      %v1084 = vpop.f32.mrb[0].mxu0
      %1085 = vmatprep.mubr.bf16.mxu0 0
      %1086 = vmatmul.mubr.bf16.gmra.mrb[0].mxu0 %v975
      %v1087 = vpop.f32.mrb[0].mxu0
      %v1088 = vadd.f32 %v996, %v1087
      %v1089 = vpop.f32.mrb[0].mxu0
      %v1090 = vpop.f32.mrb[0].mxu0
      %v1091 = vadd.f32 %v996, %v1090
      %v1092 = vpop.f32.mrb[0].mxu0
      %1093 = vdwg.mxu0
      %v1094 = vmax.f32 %v1080, 0.0
      %v1095 = vmax.f32 %v1083, 0.0
      %v1096 = vmax.f32 %v1088, 0.0
      %v1097 = vmax.f32 %v1091, 0.0
      %v1098 = vpack.c.bf16 %v1095, %v1094
      %v1099 = vpack.c.bf16 %v1097, %v1096
      %s1100 = scalar_lea.vmem %s2, 128
      %v1101 = vld [vmem:[%s1100] sm:$0xf]
      %v1102 = vld [vmem:[%s1100 + $0x4] sm:$0xf]
      %v1103 = vld [vmem:[%s1100 + $0x8] sm:$0xf]
      %v1104 = vld [vmem:[%s1100 + $0xc] sm:$0xf]
      %v1105 = vld [vmem:[%s1100 + $0x10] sm:$0xf]
      %v1106 = vld [vmem:[%s1100 + $0x14] sm:$0xf]
      %v1107 = vld [vmem:[%s1100 + $0x18] sm:$0xf]
      %v1108 = vld [vmem:[%s1100 + $0x1c] sm:$0xf]
      %v1109 = vld [vmem:[%s1100 + $0x20] sm:$0xf]
      %v1110 = vld [vmem:[%s1100 + $0x24] sm:$0xf]
      %v1111 = vld [vmem:[%s1100 + $0x28] sm:$0xf]
      %v1112 = vld [vmem:[%s1100 + $0x2c] sm:$0xf]
      %v1113 = vld [vmem:[%s1100 + $0x30] sm:$0xf]
      %v1114 = vld [vmem:[%s1100 + $0x34] sm:$0xf]
      %v1115 = vld [vmem:[%s1100 + $0x38] sm:$0xf]
      %v1116 = vld [vmem:[%s1100 + $0x3c] sm:$0xf]
      %v1117 = vlaneseq
      %v1118 = vshrl.u32 %v1117, 7
      %v1119 = vsub.s32 3, %v1118
      %v1120 = vrot.slane %v205, %v1119
      %v1137 = vunpack.c.l.b16 %v1101
      %v1138 = vunpack.c.l.b16 %v1102
      %v1139 = vunpack.c.l.b16 %v1103
      %v1140 = vunpack.c.l.b16 %v1104
      %v1141 = vunpack.c.l.b16 %v1105
      %v1142 = vunpack.c.l.b16 %v1106
      %v1143 = vunpack.c.l.b16 %v1107
      %v1144 = vunpack.c.l.b16 %v1108
      %v1145 = vunpack.c.l.b16 %v1109
      %v1146 = vunpack.c.l.b16 %v1110
      %v1147 = vunpack.c.l.b16 %v1111
      %v1148 = vunpack.c.l.b16 %v1112
      %v1149 = vunpack.c.l.b16 %v1113
      %v1150 = vunpack.c.l.b16 %v1114
      %v1151 = vunpack.c.l.b16 %v1115
      %v1152 = vunpack.c.l.b16 %v1116
      %v1153 = vpack.c.b16 %v1138, %v1137
      %v1154 = vpack.c.b16 %v1140, %v1139
      %v1155 = vpack.c.b16 %v1142, %v1141
      %v1156 = vpack.c.b16 %v1144, %v1143
      %v1157 = vpack.c.b16 %v1146, %v1145
      %v1158 = vpack.c.b16 %v1148, %v1147
      %v1159 = vpack.c.b16 %v1150, %v1149
      %v1160 = vpack.c.b16 %v1152, %v1151
      %1169 = vmatprep.subr.bf16.mxu0 0
      %1170 = vmatpush1.bf16.msra.mxu0 %v1153
      %1171 = vmatprep.subr.bf16.mxu0 0
      %1172 = vmatpush1.bf16.msra.mxu0 %v1154
      %1173 = vmatprep.subr.bf16.mxu0 0
      %1174 = vmatpush1.bf16.msra.mxu0 %v1155
      %1175 = vmatprep.subr.bf16.mxu0 0
      %1176 = vmatpush1.bf16.msra.mxu0 %v1156
      %1177 = vmatprep.subr.bf16.mxu0 0
      %1178 = vmatpush1.bf16.msra.mxu0 %v1157
      %1179 = vmatprep.subr.bf16.mxu0 0
      %1180 = vmatpush1.bf16.msra.mxu0 %v1158
      %1181 = vmatprep.subr.bf16.mxu0 0
      %1182 = vmatpush1.bf16.msra.mxu0 %v1159
      %1183 = vmatprep.subr.bf16.mxu0 0
      %1184 = vmatpush1.bf16.msra.mxu0 %v1160
      %1185 = vmatprep.subr.bf16.mxu0 0
      %1186 = vmatpush1.bf16.msra.mxu0 0
      %1187 = vmatprep.subr.bf16.mxu0 0
      %1188 = vmatpush1.bf16.msra.mxu0 0
      %1189 = vmatprep.subr.bf16.mxu0 0
      %1190 = vmatpush1.bf16.msra.mxu0 0
      %1191 = vmatprep.subr.bf16.mxu0 0
      %1192 = vmatpush1.bf16.msra.mxu0 0
      %1193 = vmatprep.subr.bf16.mxu0 0
      %1194 = vmatpush1.bf16.msra.mxu0 0
      %1195 = vmatprep.subr.bf16.mxu0 0
      %1196 = vmatpush1.bf16.msra.mxu0 0
      %1197 = vmatprep.subr.bf16.mxu0 0
      %1198 = vmatpush1.bf16.msra.mxu0 0
      %1199 = vmatprep.subr.bf16.mxu0 0
      %1200 = vmatpush1.bf16.msra.mxu0 0
      %1201 = vmatprep.mubr.bf16.mxu0 0
      %1202 = vmatmul.mubr.bf16.gmra.mrb[0].mxu0 %v1098
      %v1203 = vpop.f32.mrb[0].mxu0
      %v1204 = vadd.f32 %v1120, %v1203
      %v1205 = vpop.f32.mrb[0].mxu0
      %v1206 = vpop.f32.mrb[0].mxu0
      %v1207 = vadd.f32 %v1120, %v1206
      %v1208 = vpop.f32.mrb[0].mxu0
      %1209 = vmatprep.mubr.bf16.mxu0 0
      %1210 = vmatmul.mubr.bf16.gmra.mrb[0].mxu0 %v1099
      %v1211 = vpop.f32.mrb[0].mxu0
      %v1212 = vadd.f32 %v1120, %v1211
      %v1213 = vpop.f32.mrb[0].mxu0
      %v1214 = vpop.f32.mrb[0].mxu0
      %v1215 = vadd.f32 %v1120, %v1214
      %v1216 = vpop.f32.mrb[0].mxu0
      %1217 = vdwg.mxu0
      %1218 = vmax.xlane.f32.xlu0 %v1204
      %v1219 = vpop.xlane.xlu0 %1218
      %1220 = vmax.xlane.f32.xlu0 %v1207
      %v1221 = vpop.xlane.xlu0 %1220
      %1222 = vmax.xlane.f32.xlu0 %v1212
      %v1223 = vpop.xlane.xlu0 %1222
      %1224 = vmax.xlane.f32.xlu0 %v1215
      %v1225 = vpop.xlane.xlu0 %1224
      %v1226 = vsub.f32 %v1204, %v1219
      %v1227 = vsub.f32 %v1207, %v1221
      %v1228 = vsub.f32 %v1212, %v1223
      %v1229 = vsub.f32 %v1215, %v1225
      %v1230 = vmul.f32 %v1226, 1.442695
      %v1231 = vpow.pop %v1230
      %v1232 = vmul.f32 %v1227, 1.442695
      %v1233 = vpow.pop %v1232
      %v1234 = vmul.f32 %v1228, 1.442695
      %v1235 = vpow.pop %v1234
      %v1236 = vmul.f32 %v1229, 1.442695
      %v1237 = vpow.pop %v1236
      %1238 = vadd.xlane.f32.xlu0 %v1231
      %v1239 = vpop.xlane.xlu0 %1238
      %1240 = vadd.xlane.f32.xlu0 %v1233
      %v1241 = vpop.xlane.xlu0 %1240
      %1242 = vadd.xlane.f32.xlu0 %v1235
      %v1243 = vpop.xlane.xlu0 %1242
      %1244 = vadd.xlane.f32.xlu0 %v1237
      %v1245 = vpop.xlane.xlu0 %1244
      %v1246 = vlog2.pop %v1239
      %v1247 = vmul.f32 %v1246, 0.6931472
      %v1248 = vlog2.pop %v1241
      %v1249 = vmul.f32 %v1248, 0.6931472
      %v1250 = vlog2.pop %v1243
      %v1251 = vmul.f32 %v1250, 0.6931472
      %v1252 = vlog2.pop %v1245
      %v1253 = vmul.f32 %v1252, 0.6931472
      %v1254 = vsub.f32 %v1226, %v1247
      %v1255 = vsub.f32 %v1227, %v1249
      %v1256 = vsub.f32 %v1228, %v1251
      %v1257 = vsub.f32 %v1229, %v1253
      %v1258 = vpack.c.bf16 %v1255, %v1254
      %v1259 = vpack.c.bf16 %v1257, %v1256
      %v1262 = vunpack.c.l.b16 %v1258
      %v1263 = vunpack.c.h.b16 %v1258
      %v1264 = vunpack.c.l.b16 %v1259
      %v1265 = vunpack.c.h.b16 %v1259
      %v1266 = vpack.c.b16 %v1262, %v1262
      %v1267 = vpack.c.b16 %v1263, %v1263
      %v1268 = vpack.c.b16 %v1264, %v1264
      %v1269 = vpack.c.b16 %v1265, %v1265
      %1274 = vst [vmem:[%s202] sm:$0xf] %v1266
      %1275 = vst [vmem:[%s202 + $0x4] sm:$0xf] %v1267
      %1276 = vst [vmem:[%s202 + $0x8] sm:$0xf] %v1268
      %1277 = vst [vmem:[%s202 + $0xc] sm:$0xf] %v1269
      %s1278 = smul.u32 4, %s15
      %p1279 = scmp.lt.s32.totalorder %s1278, 15
      %s1280 = scalar_select %p1279, %s1278, 15
      %s1281 = smul.addr %s1280, 4
      %s1282 = scalar_lea.vmem %s4, %s1281
      // Predicated region
      $region37: #{_net_forward.1} parent=35 // pred_check
        %p1283 = pneg %p122
      $region38: #{_net_forward.1} parent=35 // pred_check_branch
        %1285 = sbr.rel (%p1283) target = $region40
      $region39: #{_net_forward.1} parent=35 // pred_region
        %s1286 = smul.u32 4, %s15
      $region40: #{_net_forward.1} parent=35 // pred_fallthru
        _
    $region36: #{_net_forward.1} parent=5 // pred_fallthru
      _
    %p1287 = scmp.le.s32.totalorder 2, %s10
    // Predicated region
    $region41: #{_net_forward.1} parent=5 // pred_check
      %p1288 = pneg %p1287
    $region42: #{_net_forward.1} parent=5 // pred_check_branch
      %1290 = sbr.rel (%p1288) target = $region44
    $region43: #{_net_forward.1} parent=5 // pred_region
      %s1291 = ssub.s32 %s10, 2
      // Predicated region
      $region45: #{_net_forward.1} parent=43 // pred_check
        %p1292 = pneg %p128
      $region46: #{_net_forward.1} parent=43 // pred_check_branch
        %1294 = sbr.rel (%p1292) target = $region48
      $region47: #{_net_forward.1} parent=43 // pred_region
        %s1295 = smul.u32 4, %s16
        %p1296 = scmp.lt.s32.totalorder %s1295, 15
        %s1297 = scalar_select %p1296, %s1295, 15
        %s1298 = smul.addr %s1297, 4
        %s1299 = scalar_lea.vmem %s4, %s1298
      $region48: #{_net_forward.1} parent=43 // pred_fallthru
        _
    $region44: #{_net_forward.1} parent=5 // pred_fallthru
      _
  $region6: #{_net_forward.1} parent=0 // loop_footer
    %s14 = sadd.s32 1, %s10
  $region7: #{_net_forward.1} parent=0 // loop_footer_branch
    %9 = sbr.rel target = $region3
  $region8: #{_net_forward.1} parent=0 // loop_exit
    _

</llo_original>
